<compile_context>
chip_gen: v7x
topology: tpu7x:2x2x1
jax: 0.10.0
libtpu: 0.0.40
codegen_flags: <defaults>
</compile_context>

<pallas_src>
import jax
import jax.numpy as jnp
import numpy as np
from jax.experimental import pallas as pl
from jax.experimental.pallas import tpu as pltpu

_LANE = 128
_VMEM_LIMIT = 32 * 1024 * 1024      # conservative for v7x (64 MiB physical VMEM)


def _round_up(x, m):
    return (x + m - 1) // m * m


def _batch_tiling(b, max_bt=512):
    """Pick batch tile BT (multiple of 16) and padded batch B_pad.

    Large tiles fill the MXU M dim and amortize ~0.35us/step grid overhead;
    when there is enough work, split into two balanced tiles so the
    ("parallel",) axis can use both v7x TensorCores.
    """
    b16 = _round_up(max(int(b), 1), 16)
    if b16 <= 32:                         # tiny batch: one tile, minimal padding
        return b16, b16
    if b16 <= 2 * max_bt:                 # split evenly across two tiles / cores
        bt = _round_up((b16 + 1) // 2, 16)
        return bt, 2 * bt
    return max_bt, _round_up(b16, max_bt)


def _rep_spec(arr):
    # weight replicated across the batch grid (block index 0)
    return pl.BlockSpec(arr.shape, lambda i: (0,) * arr.ndim)


# --------------------------------------------------------------------------- #
# forward_fused ('joint' / 'early' / 'late_avg' / 'unified')                   #
# --------------------------------------------------------------------------- #
def _fused_kernel(ehr_ref, note_ref, wp_ref, bp_ref, wce_ref, wcp_ref, bc_ref,
                  out_ref):
    C_p = bc_ref.shape[1]

    # projection = Linear(Dn -> De); N padded to De_p (lane dense)
    proj = (jnp.dot(note_ref[...], wp_ref[...],
                    preferred_element_type=jnp.float32) + bp_ref[...])

    # fused_cls = Linear(2*De -> C) + Sigmoid on cat([ehr, proj], 1),
    # implemented as split-weight matmuls (no in-kernel lane concat).
    logits = (jnp.dot(ehr_ref[...], wce_ref[...],
                      preferred_element_type=jnp.float32)
              + jnp.dot(proj.astype(jnp.bfloat16), wcp_ref[...],
                        preferred_element_type=jnp.float32)
              + bc_ref[...])

    # single lane-dense bf16 output slab: [preds | proj]
    out_ref[:, :C_p] = jax.nn.sigmoid(logits).astype(out_ref.dtype)
    out_ref[:, C_p:] = proj.astype(out_ref.dtype)


def prepare_fused_params(params, De, Dn, C):
    """One-time packing: transpose / split / pad N dims to lane-dense, bf16."""
    De_p = _round_up(De, _LANE)
    C_p = _round_up(C, _LANE)
    f32 = jnp.float32
    wp = jnp.zeros((Dn, De_p), f32).at[:, :De].set(jnp.asarray(params["proj_w"]).T)
    bp = jnp.zeros((1, De_p), f32).at[0, :De].set(jnp.asarray(params["proj_b"]))
    wc = jnp.asarray(params["cls_w"], f32)                         # [C, 2*De]
    wce = jnp.zeros((De, C_p), f32).at[:, :C].set(wc[:, :De].T)    # K = real De
    wcp = jnp.zeros((De_p, C_p), f32).at[:De, :C].set(wc[:, De:].T)
    bc = jnp.zeros((1, C_p), f32).at[0, :C].set(jnp.asarray(params["cls_b"]))
    return {"wp": wp.astype(jnp.bfloat16), "bp": bp,
            "wce": wce.astype(jnp.bfloat16), "wcp": wcp.astype(jnp.bfloat16),
            "bc": bc, "De_p": De_p, "C_p": C_p}


def make_fused_forward(params, De, Dn, C, max_bt=512):
    prep = prepare_fused_params(params, De, Dn, C)
    De_p, C_p = prep["De_p"], prep["C_p"]
    wp, bp, wce, wcp, bc = (prep["wp"], prep["bp"], prep["wce"], prep["wcp"],
                            prep["bc"])

    @jax.jit
    def forward(ehr_preds, ehr_feats, note_preds, note_feats):
        B = ehr_feats.shape[0]
        BT, B_pad = _batch_tiling(B, max_bt)
        G = B_pad // BT

        # batch pad + bf16 cast; K dims kept at their real widths (no 128 pad)
        ehr_in = jnp.zeros((B_pad, De), jnp.bfloat16).at[:B].set(
            ehr_feats.astype(jnp.bfloat16))
        note_in = jnp.zeros((B_pad, Dn), jnp.bfloat16).at[:B].set(
            note_feats.astype(jnp.bfloat16))

        flops = 2 * B_pad * (Dn * De_p + De * C_p + De_p * C_p)
        bytes_acc = (2 * B_pad * (De + Dn)
                     + 2 * (Dn * De_p + De * C_p + De_p * C_p)
                     + 4 * (De_p + C_p)
                     + 2 * B_pad * (C_p + De_p))

        out = pl.pallas_call(
            _fused_kernel,
            out_shape=jax.ShapeDtypeStruct((B_pad, C_p + De_p), jnp.bfloat16),
            grid=(G,),
            in_specs=[
                pl.BlockSpec((BT, De), lambda i: (i, 0)),
                pl.BlockSpec((BT, Dn), lambda i: (i, 0)),
                _rep_spec(wp), _rep_spec(bp),
                _rep_spec(wce), _rep_spec(wcp), _rep_spec(bc),
            ],
            out_specs=pl.BlockSpec((BT, C_p + De_p), lambda i: (i, 0)),
            compiler_params=pltpu.CompilerParams(
                dimension_semantics=("parallel",),
                vmem_limit_bytes=_VMEM_LIMIT),
            cost_estimate=pl.CostEstimate(
                flops=flops, transcendentals=B_pad * C_p,
                bytes_accessed=bytes_acc),
        )(ehr_in, note_in, wp, bp, wce, wcp, bc)

        fused = out[:B, :C].astype(jnp.float32)
        proj = out[:B, C_p:C_p + De].astype(jnp.float32)

        # align_loss = CosineLoss(projected, ehr_feats); tiny reduce kept in the
        # (jitted) wrapper so it fuses with the slice.
        # TODO(synk): CosineLoss is not defined in the source file; implemented
        # as mean(1 - cosine_similarity) with torch-style eps clamp.
        eps = 1e-8
        n1 = jnp.maximum(jnp.sqrt(jnp.sum(proj * proj, axis=-1)), eps)
        n2 = jnp.maximum(jnp.sqrt(jnp.sum(ehr_feats * ehr_feats, axis=-1)), eps)
        cos = jnp.sum(proj * ehr_feats, axis=-1) / (n1 * n2)
        align_loss = jnp.mean(1.0 - cos)

        late_avg = (note_preds + ehr_preds) * 0.5   # trivial elementwise op

        return {"early": fused, "joint": fused, "unified": fused,
                "late_avg": late_avg, "align_loss": align_loss,
                "ehr_feats": ehr_feats, "note_feats": proj}

    return forward


# --------------------------------------------------------------------------- #
# forward_lstm_fused ('lstm', labels_set != 'note')                            #
# --------------------------------------------------------------------------- #
def _lstm_kernel(ehr_ref, note_ref, pairs_ref,
                 wp_ref, bp_ref, wx_ref, wh_ref, b_ref, wcls_ref, bcls_ref,
                 out_ref):
    De_k = ehr_ref.shape[1]                      # real (16-rounded) ehr width
    Hg = wh_ref.shape[0]                         # per-gate lane stride
    C_p = bcls_ref.shape[1]
    pairs = pairs_ref[...]                       # [BT, 1], 1.0 if paired

    # torch order: projection first, THEN zero unpaired rows
    # (note_feats = projection(note_feats); note_feats[~pairs] = 0)
    proj = (jnp.dot(note_ref[...], wp_ref[...],
                    preferred_element_type=jnp.float32) + bp_ref[...]) * pairs

    bias = b_ref[...]                            # [1, 4*Hg] (b_ih + b_hh)

    # ---- step 0: x = ehr_feats, h0 = c0 = 0 -> no h-matmul, c1 = i*g ---------
    g0 = jnp.dot(ehr_ref[...], wx_ref[:De_k, :],
                 preferred_element_type=jnp.float32) + bias        # [BT, 4*Hg]
    s0 = jax.nn.sigmoid(g0)                      # one EUP pass covers i/f/o
    gc0 = jnp.tanh(g0[:, 2 * Hg:3 * Hg])
    c1 = s0[:, 0:Hg] * gc0
    h1 = s0[:, 3 * Hg:4 * Hg] * jnp.tanh(c1)

    # ---- step 1: x = projected note; kept only where pairs (seq len == 2) ----
    g1 = (jnp.dot(proj.astype(jnp.bfloat16), wx_ref[...],
                  preferred_element_type=jnp.float32)
          + jnp.dot(h1.astype(jnp.bfloat16), wh_ref[...],
                    preferred_element_type=jnp.float32)
          + bias)
    s1 = jax.nn.sigmoid(g1)
    gc1 = jnp.tanh(g1[:, 2 * Hg:3 * Hg])
    c2 = s1[:, Hg:2 * Hg] * c1 + s1[:, 0:Hg] * gc1
    h2 = s1[:, 3 * Hg:4 * Hg] * jnp.tanh(c2)

    ht = jnp.where(pairs > 0.5, h2, h1)          # packed-sequence final hidden

    # lstm_fused_cls = Linear(Dn -> C) + Sigmoid
    preds = jax.nn.sigmoid(
        jnp.dot(ht.astype(jnp.bfloat16), wcls_ref[...],
                preferred_element_type=jnp.float32) + bcls_ref[...])

    out_ref[:, :C_p] = preds.astype(out_ref.dtype)
    out_ref[:, C_p:] = proj.astype(out_ref.dtype)


def prepare_lstm_params(params, De, Dn, C):
    """One-time packing of nn.LSTM(De -> Dn) + heads.

    Gate order i, f, g, o (torch).  Per-gate lane stride Hg = 64 when Dn <= 64
    (two gates per 128-lane tile), else round_up(Dn, 128).  b_ih + b_hh summed.
    """
    De_k = _round_up(De, 16)
    De_p = _round_up(De, _LANE)
    Hg = 64 if Dn <= 64 else _round_up(Dn, _LANE)
    C_p = _round_up(C, _LANE)
    f32 = jnp.float32

    wp = jnp.zeros((Dn, De_p), f32).at[:, :De].set(jnp.asarray(params["proj_w"]).T)
    bp = jnp.zeros((1, De_p), f32).at[0, :De].set(jnp.asarray(params["proj_b"]))

    w_ih = jnp.asarray(params["lstm_w_ih"], f32)          # [4*Dn, De]
    w_hh = jnp.asarray(params["lstm_w_hh"], f32)          # [4*Dn, Dn]
    b_sum = (jnp.asarray(params["lstm_b_ih"], f32)
             + jnp.asarray(params["lstm_b_hh"], f32))     # [4*Dn]

    wx = jnp.zeros((De_p, 4 * Hg), f32)
    wh = jnp.zeros((Hg, 4 * Hg), f32)
    b = jnp.zeros((1, 4 * Hg), f32)
    for k in range(4):                                    # i, f, g, o
        wx = wx.at[:De, k * Hg:k * Hg + Dn].set(w_ih[k * Dn:(k + 1) * Dn, :].T)
        wh = wh.at[:Dn, k * Hg:k * Hg + Dn].set(w_hh[k * Dn:(k + 1) * Dn, :].T)
        b = b.at[0, k * Hg:k * Hg + Dn].set(b_sum[k * Dn:(k + 1) * Dn])

    wcls = jnp.zeros((Hg, C_p), f32).at[:Dn, :C].set(
        jnp.asarray(params["lstm_cls_w"], f32).T)
    bcls = jnp.zeros((1, C_p), f32).at[0, :C].set(jnp.asarray(params["lstm_cls_b"]))

    return {"wp": wp.astype(jnp.bfloat16), "bp": bp,
            "wx": wx.astype(jnp.bfloat16), "wh": wh.astype(jnp.bfloat16), "b": b,
            "wcls": wcls.astype(jnp.bfloat16), "bcls": bcls,
            "De_k": De_k, "De_p": De_p, "Hg": Hg, "C_p": C_p}


def make_lstm_forward(params, De, Dn, C, max_bt=512):
    prep = prepare_lstm_params(params, De, Dn, C)
    De_k, De_p, Hg, C_p = prep["De_k"], prep["De_p"], prep["Hg"], prep["C_p"]
    wp, bp, wx, wh, b = prep["wp"], prep["bp"], prep["wx"], prep["wh"], prep["b"]
    wcls, bcls = prep["wcls"], prep["bcls"]

    @jax.jit
    def forward(ehr_feats, note_feats, pairs):
        B = ehr_feats.shape[0]
        BT, B_pad = _batch_tiling(B, max_bt)
        G = B_pad // BT

        ehr_in = jnp.zeros((B_pad, De_k), jnp.bfloat16).at[:B, :De].set(
            ehr_feats.astype(jnp.bfloat16))
        note_in = jnp.zeros((B_pad, Dn), jnp.bfloat16).at[:B].set(
            note_feats.astype(jnp.bfloat16))
        pairs_in = jnp.zeros((B_pad, 1), jnp.float32).at[:B, 0].set(
            pairs.astype(jnp.float32))

        flops = 2 * B_pad * (Dn * De_p + (De_k + De_p + Hg) * 4 * Hg + Hg * C_p)
        trans = B_pad * (10 * Hg + C_p)
        bytes_acc = (2 * B_pad * (De_k + Dn) + 4 * B_pad
                     + 2 * (Dn * De_p + (De_p + Hg) * 4 * Hg + Hg * C_p)
                     + 4 * (De_p + 4 * Hg + C_p)
                     + 2 * B_pad * (C_p + De_p))

        out = pl.pallas_call(
            _lstm_kernel,
            out_shape=jax.ShapeDtypeStruct((B_pad, C_p + De_p), jnp.bfloat16),
            grid=(G,),
            in_specs=[
                pl.BlockSpec((BT, De_k), lambda i: (i, 0)),
                pl.BlockSpec((BT, Dn), lambda i: (i, 0)),
                pl.BlockSpec((BT, 1), lambda i: (i, 0)),
                _rep_spec(wp), _rep_spec(bp),
                _rep_spec(wx), _rep_spec(wh), _rep_spec(b),
                _rep_spec(wcls), _rep_spec(bcls),
            ],
            out_specs=pl.BlockSpec((BT, C_p + De_p), lambda i: (i, 0)),
            compiler_params=pltpu.CompilerParams(
                dimension_semantics=("parallel",),
                vmem_limit_bytes=_VMEM_LIMIT),
            cost_estimate=pl.CostEstimate(
                flops=flops, transcendentals=trans, bytes_accessed=bytes_acc),
        )(ehr_in, note_in, pairs_in, wp, bp, wx, wh, b, wcls, bcls)

        preds = out[:B, :C].astype(jnp.float32)
        proj = out[:B, C_p:C_p + De].astype(jnp.float32)
        return {"lstm": preds, "ehr_feats": ehr_feats, "note_feats": proj}

    return forward


# --------------------------------------------------------------------------- #
# pure-JAX references, deterministic params, smoke test                        #
# --------------------------------------------------------------------------- #
def _init_params(key, De, Dn, C):
    ks = jax.random.split(key, 10)
    s = 0.05
    return {
        "proj_w": jax.random.normal(ks[0], (De, Dn), jnp.float32) * s,
        "proj_b": jax.random.normal(ks[1], (De,), jnp.float32) * s,
        "cls_w": jax.random.normal(ks[2], (C, 2 * De), jnp.float32) * s,
        "cls_b": jax.random.normal(ks[3], (C,), jnp.float32) * s,
        # nn.LSTM(De -> Dn) torch layout, gate order i, f, g, o
        "lstm_w_ih": jax.random.normal(ks[4], (4 * Dn, De), jnp.float32) * s,
        "lstm_w_hh": jax.random.normal(ks[5], (4 * Dn, Dn), jnp.float32) * s,
        "lstm_b_ih": jax.random.normal(ks[6], (4 * Dn,), jnp.float32) * s,
        "lstm_b_hh": jax.random.normal(ks[7], (4 * Dn,), jnp.float32) * s,
        "lstm_cls_w": jax.random.normal(ks[8], (C, Dn), jnp.float32) * s,
        "lstm_cls_b": jax.random.normal(ks[9], (C,), jnp.float32) * s,
    }


def _ref_fused(params, ehr_feats, note_feats):
    proj = note_feats @ params["proj_w"].T + params["proj_b"]
    feats = jnp.concatenate([ehr_feats, proj], axis=1)
    fused = jax.nn.sigmoid(feats @ params["cls_w"].T + params["cls_b"])
    return fused, proj


def _ref_lstm(params, ehr_feats, note_feats, pairs):
    Dn = note_feats.shape[1]
    proj = note_feats @ params["proj_w"].T + params["proj_b"]
    proj = proj * pairs[:, None].astype(proj.dtype)
    w_ih, w_hh = params["lstm_w_ih"], params["lstm_w_hh"]
    bias = params["lstm_b_ih"] + params["lstm_b_hh"]

    def step(x, h, c):
        g = x @ w_ih.T + h @ w_hh.T + bias
        i = jax.nn.sigmoid(g[:, :Dn]); f = jax.nn.sigmoid(g[:, Dn:2 * Dn])
        gg = jnp.tanh(g[:, 2 * Dn:3 * Dn]); o = jax.nn.sigmoid(g[:, 3 * Dn:])
        c = f * c + i * gg
        return o * jnp.tanh(c), c

    B = ehr_feats.shape[0]
    h1, c1 = step(ehr_feats, jnp.zeros((B, Dn)), jnp.zeros((B, Dn)))
    h2, _ = step(proj, h1, c1)
    ht = jnp.where(pairs[:, None], h2, h1)          # packed-seq final hidden
    preds = jax.nn.sigmoid(ht @ params["lstm_cls_w"].T + params["lstm_cls_b"])
    return preds, proj


if __name__ == "__main__":
    B, De, Dn, C = 4, 32, 64, 8     # batch, ehr feats_dim, note feats_dim, classes
    key = jax.random.PRNGKey(0)
    k1, k2, k3, k4, kp = jax.random.split(key, 5)

    # sub-encoder outputs (external ehr_model / note_model), taken as inputs
    # TODO(synk): ehr_model / note_model / uni_* branches are external encoders
    # and are not translated; their outputs are inputs here.
    ehr_feats = jax.random.normal(k1, (B, De), jnp.float32)
    note_feats = jax.random.normal(k2, (B, Dn), jnp.float32)
    ehr_preds = jax.nn.sigmoid(jax.random.normal(k3, (B, C), jnp.float32))
    note_preds = jax.nn.sigmoid(jax.random.normal(k4, (B, C), jnp.float32))
    pairs = jnp.array([True, False, True, True])

    params = _init_params(kp, De, Dn, C)
    fused_forward = make_fused_forward(params, De, Dn, C)   # one-time packing
    lstm_forward = make_lstm_forward(params, De, Dn, C)     # one-time packing

    out_joint = fused_forward(ehr_preds, ehr_feats, note_preds, note_feats)
    out_lstm = lstm_forward(ehr_feats, note_feats, pairs)
    jax.block_until_ready(out_joint)
    jax.block_until_ready(out_lstm)

    assert out_joint["joint"].shape == (B, C)
    assert out_joint["late_avg"].shape == (B, C)
    assert out_joint["note_feats"].shape == (B, De)
    assert out_joint["align_loss"].shape == ()
    assert out_lstm["lstm"].shape == (B, C)
    assert out_lstm["note_feats"].shape == (B, De)

    ref_fused, ref_proj = _ref_fused(params, ehr_feats, note_feats)
    ref_lstm_preds, ref_lstm_proj = _ref_lstm(params, ehr_feats, note_feats, pairs)

    def _close(a, b, tol=5e-2):   # bf16 matmul / writeback tolerance
        return bool(np.max(np.abs(np.asarray(a) - np.asarray(b))) < tol)

    assert _close(out_joint["joint"], ref_fused)
    assert _close(out_joint["note_feats"], ref_proj)
    assert _close(out_lstm["lstm"], ref_lstm_preds)
    assert _close(out_lstm["note_feats"], ref_lstm_proj)
    assert bool(np.isfinite(np.asarray(out_joint["align_loss"])))
    assert bool(np.isfinite(np.asarray(out_joint["joint"])).all())
    assert bool(np.isfinite(np.asarray(out_lstm["lstm"])).all())
    print("KERNEL_OK")
</pallas_src>

<mosaic_0001>
module attributes {stable_mosaic.version = 11 : i64} {
  func.func @_fused_kernel(%arg0: i32, %arg1: memref<16x32xbf16, #tpu.memory_space<vmem>>, %arg2: memref<16x64xbf16, #tpu.memory_space<vmem>>, %arg3: memref<64x128xbf16, #tpu.memory_space<vmem>>, %arg4: memref<1x128xf32, #tpu.memory_space<vmem>>, %arg5: memref<32x128xbf16, #tpu.memory_space<vmem>>, %arg6: memref<128x128xbf16, #tpu.memory_space<vmem>>, %arg7: memref<1x128xf32, #tpu.memory_space<vmem>>, %arg8: memref<16x256xbf16, #tpu.memory_space<vmem>>) attributes {dimension_semantics = [#tpu.dimension_semantics<parallel>], iteration_bounds = array<i64: 1>, scalar_prefetch = 0 : i64, scratch_operands = 0 : i64, tpu.core_type = #tpu.core_type<tc>, window_params = [{transform_indices = @transform_0, window_bounds = array<i64: 16, 32>}, {transform_indices = @transform_1, window_bounds = array<i64: 16, 64>}, {pipeline_mode = #tpu.pipeline_mode<synchronous>, transform_indices = @transform_2, window_bounds = array<i64: 64, 128>}, {pipeline_mode = #tpu.pipeline_mode<synchronous>, transform_indices = @transform_3, window_bounds = array<i64: 1, 128>}, {pipeline_mode = #tpu.pipeline_mode<synchronous>, transform_indices = @transform_4, window_bounds = array<i64: 32, 128>}, {pipeline_mode = #tpu.pipeline_mode<synchronous>, transform_indices = @transform_5, window_bounds = array<i64: 128, 128>}, {pipeline_mode = #tpu.pipeline_mode<synchronous>, transform_indices = @transform_6, window_bounds = array<i64: 1, 128>}, {transform_indices = @transform_7, window_bounds = array<i64: 16, 256>}]} {
    %c0 = arith.constant 0 : index
    %c0_0 = arith.constant 0 : index
    %0 = vector.load %arg2[%c0, %c0_0] : memref<16x64xbf16, #tpu.memory_space<vmem>>, vector<16x64xbf16>
    %c0_1 = arith.constant 0 : index
    %c0_2 = arith.constant 0 : index
    %1 = vector.load %arg3[%c0_1, %c0_2] : memref<64x128xbf16, #tpu.memory_space<vmem>>, vector<64x128xbf16>
    %cst = arith.constant dense<0.000000e+00> : vector<16x128xf32>
    %2 = tpu.matmul %0, %1, %cst {dimension_numbers = #tpu.dot_dimension_numbers<[1], [0], [0], [1], [0, 0, 1, 1], [], []>} : vector<16x64xbf16>, vector<64x128xbf16>, vector<16x128xf32> -> vector<16x128xf32>
    %c0_3 = arith.constant 0 : index
    %c0_4 = arith.constant 0 : index
    %3 = vector.load %arg4[%c0_3, %c0_4] : memref<1x128xf32, #tpu.memory_space<vmem>>, vector<1x128xf32>
    %4 = vector.broadcast %3 : vector<1x128xf32> to vector<16x128xf32>
    %5 = arith.addf %2, %4 : vector<16x128xf32>
    %c0_5 = arith.constant 0 : index
    %c0_6 = arith.constant 0 : index
    %6 = vector.load %arg1[%c0_5, %c0_6] : memref<16x32xbf16, #tpu.memory_space<vmem>>, vector<16x32xbf16>
    %c0_7 = arith.constant 0 : index
    %c0_8 = arith.constant 0 : index
    %7 = vector.load %arg5[%c0_7, %c0_8] : memref<32x128xbf16, #tpu.memory_space<vmem>>, vector<32x128xbf16>
    %cst_9 = arith.constant dense<0.000000e+00> : vector<16x128xf32>
    %8 = tpu.matmul %6, %7, %cst_9 {dimension_numbers = #tpu.dot_dimension_numbers<[1], [0], [0], [1], [0, 0, 1, 1], [], []>} : vector<16x32xbf16>, vector<32x128xbf16>, vector<16x128xf32> -> vector<16x128xf32>
    %9 = arith.truncf %5 : vector<16x128xf32> to vector<16x128xbf16>
    %c0_10 = arith.constant 0 : index
    %c0_11 = arith.constant 0 : index
    %10 = vector.load %arg6[%c0_10, %c0_11] : memref<128x128xbf16, #tpu.memory_space<vmem>>, vector<128x128xbf16>
    %cst_12 = arith.constant dense<0.000000e+00> : vector<16x128xf32>
    %11 = tpu.matmul %9, %10, %cst_12 {dimension_numbers = #tpu.dot_dimension_numbers<[1], [0], [0], [1], [0, 0, 1, 1], [], []>} : vector<16x128xbf16>, vector<128x128xbf16>, vector<16x128xf32> -> vector<16x128xf32>
    %12 = arith.addf %8, %11 : vector<16x128xf32>
    %c0_13 = arith.constant 0 : index
    %c0_14 = arith.constant 0 : index
    %13 = vector.load %arg7[%c0_13, %c0_14] : memref<1x128xf32, #tpu.memory_space<vmem>>, vector<1x128xf32>
    %14 = vector.broadcast %13 : vector<1x128xf32> to vector<16x128xf32>
    %15 = arith.addf %12, %14 : vector<16x128xf32>
    %16 = arith.negf %15 : vector<16x128xf32>
    %17 = math.exp %16 : vector<16x128xf32>
    %cst_15 = arith.constant 1.000000e+00 : f32
    %18 = vector.broadcast %cst_15 : f32 to vector<16x128xf32>
    %19 = arith.addf %18, %17 : vector<16x128xf32>
    %20 = arith.divf %18, %19 : vector<16x128xf32>
    %21 = arith.truncf %20 : vector<16x128xf32> to vector<16x128xbf16>
    %c0_16 = arith.constant 0 : index
    %c0_17 = arith.constant 0 : index
    %22 = vector.load %arg8[%c0_16, %c0_17] : memref<16x256xbf16, #tpu.memory_space<vmem>>, vector<16x128xbf16>
    tpu.vector_store %arg8[%c0_16, %c0_17], %21 {strides = array<i32>} : memref<16x256xbf16, #tpu.memory_space<vmem>>, vector<16x128xbf16>,
    %23 = arith.truncf %5 : vector<16x128xf32> to vector<16x128xbf16>
    %c0_18 = arith.constant 0 : index
    %c128 = arith.constant 128 : index
    %24 = vector.load %arg8[%c0_18, %c128] : memref<16x256xbf16, #tpu.memory_space<vmem>>, vector<16x128xbf16>
    tpu.vector_store %arg8[%c0_18, %c128], %23 {strides = array<i32>} : memref<16x256xbf16, #tpu.memory_space<vmem>>, vector<16x128xbf16>,
    return
  }
  func.func @transform_0(%arg0: i32) -> (i32, i32) {
    %c0_i32 = arith.constant 0 : i32
    %c0_i32_0 = arith.constant 0 : i32
    return %arg0, %c0_i32 : i32, i32
  }
  func.func @transform_1(%arg0: i32) -> (i32, i32) {
    %c0_i32 = arith.constant 0 : i32
    %c0_i32_0 = arith.constant 0 : i32
    return %arg0, %c0_i32 : i32, i32
  }
  func.func @transform_2(%arg0: i32) -> (i32, i32) {
    %c0_i32 = arith.constant 0 : i32
    %c0_i32_0 = arith.constant 0 : i32
    %c0_i32_1 = arith.constant 0 : i32
    return %c0_i32, %c0_i32_0 : i32, i32
  }
  func.func @transform_3(%arg0: i32) -> (i32, i32) {
    %c0_i32 = arith.constant 0 : i32
    %c0_i32_0 = arith.constant 0 : i32
    %c0_i32_1 = arith.constant 0 : i32
    return %c0_i32, %c0_i32_0 : i32, i32
  }
  func.func @transform_4(%arg0: i32) -> (i32, i32) {
    %c0_i32 = arith.constant 0 : i32
    %c0_i32_0 = arith.constant 0 : i32
    %c0_i32_1 = arith.constant 0 : i32
    return %c0_i32, %c0_i32_0 : i32, i32
  }
  func.func @transform_5(%arg0: i32) -> (i32, i32) {
    %c0_i32 = arith.constant 0 : i32
    %c0_i32_0 = arith.constant 0 : i32
    %c0_i32_1 = arith.constant 0 : i32
    return %c0_i32, %c0_i32_0 : i32, i32
  }
  func.func @transform_6(%arg0: i32) -> (i32, i32) {
    %c0_i32 = arith.constant 0 : i32
    %c0_i32_0 = arith.constant 0 : i32
    %c0_i32_1 = arith.constant 0 : i32
    return %c0_i32, %c0_i32_0 : i32, i32
  }
  func.func @transform_7(%arg0: i32) -> (i32, i32) {
    %c0_i32 = arith.constant 0 : i32
    %c0_i32_0 = arith.constant 0 : i32
    return %arg0, %c0_i32 : i32, i32
  }
}

</mosaic_0001>

<llo_original>
// kernel: forward.1
$region0: #{forward.1}
  #allocation0 [shape = 'u32[]', space=smem, size = 0x4, offset = 0x4, fixed_abs, tag = 'smem constant byte address 0x4 - core index']
  #allocation1 [shape = 'u32[144,128]{1,0:T(1,128)}', space=vmem, size = 0x12000, scoped, tag = 'internal scratch']
  %s0 = inlined_call_operand.vmem [shape: bf16[16,32], index: 0, kind: input, shape index: {}]
  %s1 = inlined_call_operand.vmem [shape: bf16[16,64], index: 1, kind: input, shape index: {}]
  %s2 = inlined_call_operand.hbm [shape: bf16[64,128], index: 2, kind: input, shape index: {}]
  %s3 = inlined_call_operand.vmem [shape: f32[1,128], index: 3, kind: input, shape index: {}]
  %s4 = inlined_call_operand.hbm [shape: bf16[32,128], index: 4, kind: input, shape index: {}]
  %s5 = inlined_call_operand.vmem [shape: bf16[128,128], index: 5, kind: input, shape index: {}]
  %s6 = inlined_call_operand.vmem [shape: f32[1,128], index: 6, kind: input, shape index: {}]
  %s7 = inlined_call_operand.vmem [shape: bf16[16,256], index: 7, kind: output, shape index: {}]
  %s8 = sld [smem:[#allocation0]]
  $region46: #{forward.1} parent=0
    _
  %s10 = ssub.s32 1, %s8
  %s11 = scalar_select 0, %s10, %s8
  $region1: #{forward.1} parent=0
    #allocation2 [shape = 'u8[16384]{0}', space=vmem, size = 0x4000, scoped, tag = 'input window, operand 2, single buffered']
    #allocation3 [shape = 's32[1]{0}', space=sflag, size = 0x4, scoped, tag = 'scoped memory for forward.1']
    #allocation4 [shape = 'u8[8192]{0}', space=vmem, size = 0x2000, scoped, tag = 'input window, operand 4, single buffered']
    #allocation5 [shape = 's32[1]{0}', space=sflag, size = 0x4, scoped, tag = 'scoped memory for forward.1']
    %12 = vsyncpa [#allocation3], 0
    %13 = vsyncpa [#allocation5], 0
    // Predicated region
    $region2: #{forward.1} parent=1 // pred_check
      _
    $region3: #{forward.1} parent=1 // pred_check_branch
      %15 = sbr.rel (0) target = $region5
    $region4: #{forward.1} parent=1 // pred_region
      _
    $region5: #{forward.1} parent=1 // pred_fallthru
      _
    // Predicated region
    $region6: #{forward.1} parent=1 // pred_check
      _
    $region7: #{forward.1} parent=1 // pred_check_branch
      %17 = sbr.rel (0) target = $region9
    $region8: #{forward.1} parent=1 // pred_region
      _
    $region9: #{forward.1} parent=1 // pred_fallthru
      _
    // Predicated region
    $region10: #{forward.1} parent=1 // pred_check
      _
    $region11: #{forward.1} parent=1 // pred_check_branch
      %19 = sbr.rel (0) target = $region13
    $region12: #{forward.1} parent=1 // pred_region
      %s21 = ssub.s32 512, 512
      %22 = vsyncadd [#allocation3], %s21
      %s23 = sshll.u32 [#allocation2], 4
      %s24 = int_to_ptr.vmem [resolvable:$true] %s23
      %29 = dma.hbm_to_vmem [thread:$0]  %s2, 512, %s24, [#allocation3], 64, 64, 4
    $region13: #{forward.1} parent=1 // pred_fallthru
      _
    // Predicated region
    $region14: #{forward.1} parent=1 // pred_check
      _
    $region15: #{forward.1} parent=1 // pred_check_branch
      %31 = sbr.rel (0) target = $region17
    $region16: #{forward.1} parent=1 // pred_region
      _
    $region17: #{forward.1} parent=1 // pred_fallthru
      _
    // Predicated region
    $region18: #{forward.1} parent=1 // pred_check
      _
    $region19: #{forward.1} parent=1 // pred_check_branch
      %33 = sbr.rel (0) target = $region21
    $region20: #{forward.1} parent=1 // pred_region
      %s35 = ssub.s32 256, 256
      %36 = vsyncadd [#allocation5], %s35
      %s37 = sshll.u32 [#allocation4], 4
      %s38 = int_to_ptr.vmem [resolvable:$true] %s37
      %43 = dma.hbm_to_vmem [thread:$0]  %s4, 256, %s38, [#allocation5], 64, 64, 4
    $region21: #{forward.1} parent=1 // pred_fallthru
      _
    // Predicated region
    $region22: #{forward.1} parent=1 // pred_check
      _
    $region23: #{forward.1} parent=1 // pred_check_branch
      %45 = sbr.rel (0) target = $region25
    $region24: #{forward.1} parent=1 // pred_region
      _
    $region25: #{forward.1} parent=1 // pred_fallthru
      _
    // Predicated region
    $region26: #{forward.1} parent=1 // pred_check
      _
    $region27: #{forward.1} parent=1 // pred_check_branch
      %47 = sbr.rel (0) target = $region29
    $region28: #{forward.1} parent=1 // pred_region
      _
    $region29: #{forward.1} parent=1 // pred_fallthru
      _
    // Predicated region
    $region30: #{forward.1} parent=1 // pred_check
      _
    $region31: #{forward.1} parent=1 // pred_check_branch
      %49 = sbr.rel (0) target = $region33
    $region32: #{forward.1} parent=1 // pred_region
      %50 = dma.done [#allocation3], 512
    $region33: #{forward.1} parent=1 // pred_fallthru
      _
    // Predicated region
    $region34: #{forward.1} parent=1 // pred_check
      _
    $region35: #{forward.1} parent=1 // pred_check_branch
      %52 = sbr.rel (0) target = $region37
    $region36: #{forward.1} parent=1 // pred_region
      %53 = dma.done [#allocation5], 256
    $region37: #{forward.1} parent=1 // pred_fallthru
      _
    %v55 = vld [vmem:[%s1] sm:$0xf]
    %v56 = vld [vmem:[%s1 + $0x4] sm:$0xf]
    %v57 = vld [vmem:[#allocation2] sm:$0xf]
    %v58 = vld [vmem:[#allocation2 + $0x4] sm:$0xf]
    %v59 = vld [vmem:[#allocation2 + $0x8] sm:$0xf]
    %v60 = vld [vmem:[#allocation2 + $0xc] sm:$0xf]
    %v61 = vld [vmem:[#allocation2 + $0x10] sm:$0xf]
    %v62 = vld [vmem:[#allocation2 + $0x14] sm:$0xf]
    %v63 = vld [vmem:[#allocation2 + $0x18] sm:$0xf]
    %v64 = vld [vmem:[#allocation2 + $0x1c] sm:$0xf]
    %v65 = vld [vmem:[%s3] sm:$0x1]
    %v67 = vlaneseq
    %v68 = vshrl.u32 %v67, 7
    %v69 = vsub.s32 0, %v68
    %v70 = vrot.slane %v65, %v69
    %v74 = vunpack.c.l.b16 %v55
    %v75 = vunpack.c.l.b16 %v56
    %v76 = vpack.c.b16 %v75, %v74
    %v85 = vunpack.c.l.b16 %v57
    %v86 = vunpack.c.l.b16 %v58
    %v87 = vunpack.c.l.b16 %v59
    %v88 = vunpack.c.l.b16 %v60
    %v89 = vunpack.c.l.b16 %v61
    %v90 = vunpack.c.l.b16 %v62
    %v91 = vunpack.c.l.b16 %v63
    %v92 = vunpack.c.l.b16 %v64
    %v93 = vpack.c.b16 %v86, %v85
    %v94 = vpack.c.b16 %v88, %v87
    %v95 = vpack.c.b16 %v90, %v89
    %v96 = vpack.c.b16 %v92, %v91
    %vm101 = vcmask 523264
    %v103 = vsel %vm101, %v76, 0
    %105 = vmatprep.subr.bf16.mxu0 0
    %106 = vmatpush1.bf16.msra.mxu0 %v93
    %107 = vmatprep.subr.bf16.mxu0 0
    %108 = vmatpush1.bf16.msra.mxu0 %v94
    %109 = vmatprep.subr.bf16.mxu0 0
    %110 = vmatpush1.bf16.msra.mxu0 %v95
    %111 = vmatprep.subr.bf16.mxu0 0
    %112 = vmatpush1.bf16.msra.mxu0 %v96
    %113 = vmatprep.subr.bf16.mxu0 0
    %114 = vmatpush1.bf16.msra.mxu0 0
    %115 = vmatprep.subr.bf16.mxu0 0
    %116 = vmatpush1.bf16.msra.mxu0 0
    %117 = vmatprep.subr.bf16.mxu0 0
    %118 = vmatpush1.bf16.msra.mxu0 0
    %119 = vmatprep.subr.bf16.mxu0 0
    %120 = vmatpush1.bf16.msra.mxu0 0
    %121 = vmatprep.subr.bf16.mxu0 0
    %122 = vmatpush1.bf16.msra.mxu0 0
    %123 = vmatprep.subr.bf16.mxu0 0
    %124 = vmatpush1.bf16.msra.mxu0 0
    %125 = vmatprep.subr.bf16.mxu0 0
    %126 = vmatpush1.bf16.msra.mxu0 0
    %127 = vmatprep.subr.bf16.mxu0 0
    %128 = vmatpush1.bf16.msra.mxu0 0
    %129 = vmatprep.subr.bf16.mxu0 0
    %130 = vmatpush1.bf16.msra.mxu0 0
    %131 = vmatprep.subr.bf16.mxu0 0
    %132 = vmatpush1.bf16.msra.mxu0 0
    %133 = vmatprep.subr.bf16.mxu0 0
    %134 = vmatpush1.bf16.msra.mxu0 0
    %135 = vmatprep.subr.bf16.mxu0 0
    %136 = vmatpush1.bf16.msra.mxu0 0
    %137 = vmatprep.mubr.bf16.mxu0 0
    %138 = vmatmul.mubr.bf16.gmra.mrb[0].mxu0 %v103
    %v139 = vpop.f32.mrb[0].mxu0
    %v140 = vadd.f32 %v70, %v139
    %v141 = vpop.f32.mrb[0].mxu0
    %v142 = vpop.f32.mrb[0].mxu0
    %v143 = vadd.f32 %v70, %v142
    %v144 = vpop.f32.mrb[0].mxu0
    %145 = vdwg.mxu0
    %v146 = vld [vmem:[%s0] sm:$0xf]
    %v147 = vld [vmem:[%s0 + $0x4] sm:$0xf]
    %v148 = vld [vmem:[#allocation4] sm:$0xf]
    %v149 = vld [vmem:[#allocation4 + $0x4] sm:$0xf]
    %v150 = vld [vmem:[#allocation4 + $0x8] sm:$0xf]
    %v151 = vld [vmem:[#allocation4 + $0xc] sm:$0xf]
    %v152 = vpack.c.bf16 %v143, %v140
    %v153 = vld [vmem:[%s5] sm:$0xf]
    %v154 = vld [vmem:[%s5 + $0x4] sm:$0xf]
    %v155 = vld [vmem:[%s5 + $0x8] sm:$0xf]
    %v156 = vld [vmem:[%s5 + $0xc] sm:$0xf]
    %v157 = vld [vmem:[%s5 + $0x10] sm:$0xf]
    %v158 = vld [vmem:[%s5 + $0x14] sm:$0xf]
    %v159 = vld [vmem:[%s5 + $0x18] sm:$0xf]
    %v160 = vld [vmem:[%s5 + $0x1c] sm:$0xf]
    %v161 = vld [vmem:[%s5 + $0x20] sm:$0xf]
    %v162 = vld [vmem:[%s5 + $0x24] sm:$0xf]
    %v163 = vld [vmem:[%s5 + $0x28] sm:$0xf]
    %v164 = vld [vmem:[%s5 + $0x2c] sm:$0xf]
    %v165 = vld [vmem:[%s5 + $0x30] sm:$0xf]
    %v166 = vld [vmem:[%s5 + $0x34] sm:$0xf]
    %v167 = vld [vmem:[%s5 + $0x38] sm:$0xf]
    %v168 = vld [vmem:[%s5 + $0x3c] sm:$0xf]
    %v185 = vunpack.c.l.b16 %v153
    %v186 = vunpack.c.l.b16 %v154
    %v187 = vunpack.c.l.b16 %v155
    %v188 = vunpack.c.l.b16 %v156
    %v189 = vunpack.c.l.b16 %v157
    %v190 = vunpack.c.l.b16 %v158
    %v191 = vunpack.c.l.b16 %v159
    %v192 = vunpack.c.l.b16 %v160
    %v193 = vunpack.c.l.b16 %v161
    %v194 = vunpack.c.l.b16 %v162
    %v195 = vunpack.c.l.b16 %v163
    %v196 = vunpack.c.l.b16 %v164
    %v197 = vunpack.c.l.b16 %v165
    %v198 = vunpack.c.l.b16 %v166
    %v199 = vunpack.c.l.b16 %v167
    %v200 = vunpack.c.l.b16 %v168
    %v201 = vpack.c.b16 %v186, %v185
    %v202 = vpack.c.b16 %v188, %v187
    %v203 = vpack.c.b16 %v190, %v189
    %v204 = vpack.c.b16 %v192, %v191
    %v205 = vpack.c.b16 %v194, %v193
    %v206 = vpack.c.b16 %v196, %v195
    %v207 = vpack.c.b16 %v198, %v197
    %v208 = vpack.c.b16 %v200, %v199
    %217 = vmatprep.subr.bf16.mxu0 0
    %218 = vmatpush1.bf16.msra.mxu0 %v201
    %219 = vmatprep.subr.bf16.mxu0 0
    %220 = vmatpush1.bf16.msra.mxu0 %v202
    %221 = vmatprep.subr.bf16.mxu0 0
    %222 = vmatpush1.bf16.msra.mxu0 %v203
    %223 = vmatprep.subr.bf16.mxu0 0
    %224 = vmatpush1.bf16.msra.mxu0 %v204
    %225 = vmatprep.subr.bf16.mxu0 0
    %226 = vmatpush1.bf16.msra.mxu0 %v205
    %227 = vmatprep.subr.bf16.mxu0 0
    %228 = vmatpush1.bf16.msra.mxu0 %v206
    %229 = vmatprep.subr.bf16.mxu0 0
    %230 = vmatpush1.bf16.msra.mxu0 %v207
    %231 = vmatprep.subr.bf16.mxu0 0
    %232 = vmatpush1.bf16.msra.mxu0 %v208
    %233 = vmatprep.subr.bf16.mxu0 0
    %234 = vmatpush1.bf16.msra.mxu0 0
    %235 = vmatprep.subr.bf16.mxu0 0
    %236 = vmatpush1.bf16.msra.mxu0 0
    %237 = vmatprep.subr.bf16.mxu0 0
    %238 = vmatpush1.bf16.msra.mxu0 0
    %239 = vmatprep.subr.bf16.mxu0 0
    %240 = vmatpush1.bf16.msra.mxu0 0
    %241 = vmatprep.subr.bf16.mxu0 0
    %242 = vmatpush1.bf16.msra.mxu0 0
    %243 = vmatprep.subr.bf16.mxu0 0
    %244 = vmatpush1.bf16.msra.mxu0 0
    %245 = vmatprep.subr.bf16.mxu0 0
    %246 = vmatpush1.bf16.msra.mxu0 0
    %247 = vmatprep.subr.bf16.mxu0 0
    %248 = vmatpush1.bf16.msra.mxu0 0
    %249 = vmatprep.mubr.bf16.mxu0 0
    %250 = vmatmul.mubr.bf16.gmra.mrb[0].mxu0 %v152
    %v251 = vpop.f32.mrb[0].mxu0
    %v252 = vadd.f32 0.0, %v251
    %v253 = vpop.f32.mrb[0].mxu0
    %v254 = vpop.f32.mrb[0].mxu0
    %v255 = vadd.f32 0.0, %v254
    %v256 = vpop.f32.mrb[0].mxu0
    %257 = vdwg.mxu0
    %v260 = vunpack.c.l.b16 %v146
    %v261 = vunpack.c.l.b16 %v147
    %v262 = vpack.c.b16 %v261, %v260
    %v267 = vunpack.c.l.b16 %v148
    %v268 = vunpack.c.l.b16 %v149
    %v269 = vunpack.c.l.b16 %v150
    %v270 = vunpack.c.l.b16 %v151
    %v271 = vpack.c.b16 %v268, %v267
    %v272 = vpack.c.b16 %v270, %v269
    %vm275 = vcmask 261120
    %v277 = vsel %vm275, %v262, 0
    %279 = vmatprep.subr.bf16.mxu0 0
    %280 = vmatpush1.bf16.msra.mxu0 %v271
    %281 = vmatprep.subr.bf16.mxu0 0
    %282 = vmatpush1.bf16.msra.mxu0 %v272
    %283 = vmatprep.subr.bf16.mxu0 0
    %284 = vmatpush1.bf16.msra.mxu0 0
    %285 = vmatprep.subr.bf16.mxu0 0
    %286 = vmatpush1.bf16.msra.mxu0 0
    %287 = vmatprep.subr.bf16.mxu0 0
    %288 = vmatpush1.bf16.msra.mxu0 0
    %289 = vmatprep.subr.bf16.mxu0 0
    %290 = vmatpush1.bf16.msra.mxu0 0
    %291 = vmatprep.subr.bf16.mxu0 0
    %292 = vmatpush1.bf16.msra.mxu0 0
    %293 = vmatprep.subr.bf16.mxu0 0
    %294 = vmatpush1.bf16.msra.mxu0 0
    %295 = vmatprep.subr.bf16.mxu0 0
    %296 = vmatpush1.bf16.msra.mxu0 0
    %297 = vmatprep.subr.bf16.mxu0 0
    %298 = vmatpush1.bf16.msra.mxu0 0
    %299 = vmatprep.subr.bf16.mxu0 0
    %300 = vmatpush1.bf16.msra.mxu0 0
    %301 = vmatprep.subr.bf16.mxu0 0
    %302 = vmatpush1.bf16.msra.mxu0 0
    %303 = vmatprep.subr.bf16.mxu0 0
    %304 = vmatpush1.bf16.msra.mxu0 0
    %305 = vmatprep.subr.bf16.mxu0 0
    %306 = vmatpush1.bf16.msra.mxu0 0
    %307 = vmatprep.subr.bf16.mxu0 0
    %308 = vmatpush1.bf16.msra.mxu0 0
    %309 = vmatprep.subr.bf16.mxu0 0
    %310 = vmatpush1.bf16.msra.mxu0 0
    %311 = vmatprep.mubr.bf16.mxu0 0
    %312 = vmatmul.mubr.bf16.gmra.mrb[0].mxu0 %v277
    %v313 = vpop.f32.mrb[0].mxu0
    %v314 = vadd.f32 %v252, %v313
    %v315 = vpop.f32.mrb[0].mxu0
    %v316 = vpop.f32.mrb[0].mxu0
    %v317 = vadd.f32 %v255, %v316
    %v318 = vpop.f32.mrb[0].mxu0
    %319 = vdwg.mxu0
    %v320 = vld [vmem:[%s6] sm:$0x1]
    %v322 = vlaneseq
    %v323 = vshrl.u32 %v322, 7
    %v324 = vsub.s32 0, %v323
    %v325 = vrot.slane %v320, %v324
    %v327 = vadd.f32 %v314, %v325
    %v328 = vadd.f32 %v317, %v325
    %v329 = vxor.u32 %v327, 2147483648
    %v330 = vxor.u32 %v328, 2147483648
    %v331 = vmul.f32 %v329, 1.442695
    %v332 = vpow.pop %v331
    %v333 = vmul.f32 %v330, 1.442695
    %v334 = vpow.pop %v333
    %v335 = vadd.f32 %v332, 1.0
    %v336 = vadd.f32 %v334, 1.0
    %v337 = vrcp.pop %v335
    %v338 = vmul.f32 1.0, %v337
    %v339 = vrcp.pop %v336
    %v340 = vmul.f32 1.0, %v339
    %v341 = vpack.c.bf16 %v340, %v338
    %v343 = vunpack.c.l.b16 %v341
    %v344 = vunpack.c.h.b16 %v341
    %v345 = vpack.c.b16 %v343, %v343
    %v346 = vpack.c.b16 %v344, %v344
    %349 = vst [vmem:[%s7] sm:$0xf] %v345
    %350 = vst [vmem:[%s7 + $0x8] sm:$0xf] %v346
    %v352 = vunpack.c.l.b16 %v152
    %v353 = vunpack.c.h.b16 %v152
    %v354 = vpack.c.b16 %v352, %v352
    %v355 = vpack.c.b16 %v353, %v353
    %358 = vst [vmem:[%s7 + $0x4] sm:$0xf] %v354
    %359 = vst [vmem:[%s7 + $0xc] sm:$0xf] %v355
    // Predicated region
    $region38: #{forward.1} parent=1 // pred_check
      _
    $region39: #{forward.1} parent=1 // pred_check_branch
      %361 = sbr.rel (0) target = $region41
    $region40: #{forward.1} parent=1 // pred_region
      _
    $region41: #{forward.1} parent=1 // pred_fallthru
      _
    // Predicated region
    $region42: #{forward.1} parent=1 // pred_check
      _
    $region43: #{forward.1} parent=1 // pred_check_branch
      %363 = sbr.rel (0) target = $region45
    $region44: #{forward.1} parent=1 // pred_region
      _
    $region45: #{forward.1} parent=1 // pred_fallthru
      _
    %364 = vsyncpa [#allocation3], 1
    %365 = vsyncpa [#allocation5], 1

</llo_original>
